<compile_context>
chip_gen: v6e
topology: v6e:2x2x1
jax: 0.10.0
libtpu: 0.0.40
codegen_flags: <defaults>
</compile_context>

<pallas_src>
import functools

import jax
import jax.numpy as jnp
from jax.experimental import pallas as pl
from jax.experimental.pallas import tpu as pltpu


# ---------------------------------------------------------------------------
# Kernels
# ---------------------------------------------------------------------------
def _wnorm_block_centered(lat_ref, avg_ref, o_ref, *, batch, tb):
    """One batch block: lat_ref (TB, F), avg_ref (1, F) resident, o_ref (1,1) partial sum."""
    lat = lat_ref[...].astype(jnp.float32)
    avg = avg_ref[...].astype(jnp.float32)            # (1, F) broadcasts over rows
    d = lat - avg
    ssq = jnp.sum(d * d, axis=-1, keepdims=True)      # (TB, 1) per-row sum of squares
    norms = jnp.sqrt(ssq)                             # vectorized sqrt over the block
    if batch % tb != 0:                               # mask rows past the true batch size
        row = pl.program_id(0) * tb + jax.lax.broadcasted_iota(jnp.int32, (tb, 1), 0)
        norms = jnp.where(row < batch, norms, 0.0)
    o_ref[0, 0] = jnp.sum(norms)


def _wnorm_block_plain(lat_ref, o_ref, *, batch, tb):
    """Uncentered variant: no avg input, no subtraction."""
    lat = lat_ref[...].astype(jnp.float32)
    ssq = jnp.sum(lat * lat, axis=-1, keepdims=True)
    norms = jnp.sqrt(ssq)
    if batch % tb != 0:
        row = pl.program_id(0) * tb + jax.lax.broadcasted_iota(jnp.int32, (tb, 1), 0)
        norms = jnp.where(row < batch, norms, 0.0)
    o_ref[0, 0] = jnp.sum(norms)


# ---------------------------------------------------------------------------
# Wrapper
# ---------------------------------------------------------------------------
_TARGET_BLOCK_BYTES = 8 * 1024 * 1024   # per latent block (x2 double-buffered), safe on v7x's 64 MiB VMEM


def w_norm_loss(latent, latent_avg=None, start_from_latent_avg=True, block_rows=None):
    """Pallas TPU WNormLoss.forward. latent: (B, N, D); latent_avg: (D,) or (N, D)."""
    B, N, D = latent.shape
    F = N * D
    lat2d = latent.reshape(B, F)

    # Pick the batch-block size: biggest multiple of 8 that fits the VMEM budget,
    # capped at the full batch (full-array block is always legal).
    if block_rows is None:
        elem = jnp.dtype(latent.dtype).itemsize
        tb = _TARGET_BLOCK_BYTES // max(1, F * elem)
        tb = max(8, (tb // 8) * 8)
        tb = min(B, tb)
    else:
        tb = min(B, block_rows)
    nblocks = pl.cdiv(B, tb)

    lat_spec = pl.BlockSpec((tb, F), lambda b: (b, 0))
    out_spec = pl.BlockSpec((1, 1), lambda b: (b, 0), memory_space=pltpu.SMEM)
    out_shape = jax.ShapeDtypeStruct((nblocks, 1), jnp.float32)
    cparams = pltpu.CompilerParams(
        dimension_semantics=("parallel",),        # per-block partial outputs -> safe to shard
        vmem_limit_bytes=48 * 1024 * 1024,
    )

    if start_from_latent_avg:
        assert latent_avg is not None
        # PyTorch broadcasts latent_avg over (B, N); support both (D,) and (N, D).
        avg2d = jnp.broadcast_to(latent_avg, (N, D)).reshape(1, F)
        kernel = functools.partial(_wnorm_block_centered, batch=B, tb=tb)
        partials = pl.pallas_call(
            kernel,
            out_shape=out_shape,
            grid_spec=pltpu.PrefetchScalarGridSpec(
                num_scalar_prefetch=0,
                grid=(nblocks,),
                in_specs=[
                    lat_spec,
                    pl.BlockSpec((1, F), lambda b: (0, 0)),   # resident avg buffer
                ],
                out_specs=out_spec,
            ),
            compiler_params=cparams,
        )(lat2d, avg2d)
    else:
        kernel = functools.partial(_wnorm_block_plain, batch=B, tb=tb)
        partials = pl.pallas_call(
            kernel,
            out_shape=out_shape,
            grid_spec=pltpu.PrefetchScalarGridSpec(
                num_scalar_prefetch=0,
                grid=(nblocks,),
                in_specs=[lat_spec],
                out_specs=out_spec,
            ),
            compiler_params=cparams,
        )(lat2d)

    # Finalize outside the kernel (keeps the grid axis parallel-safe).
    return jnp.sum(partials) / jnp.float32(B)


# ---------------------------------------------------------------------------
# Pure-JAX reference
# ---------------------------------------------------------------------------
def _reference(latent, latent_avg, start_from_latent_avg=True):
    lat = latent.astype(jnp.float32)
    if start_from_latent_avg:
        lat = lat - latent_avg.astype(jnp.float32)
    norms = jnp.sqrt(jnp.sum(lat * lat, axis=(1, 2)))
    return jnp.sum(norms) / latent.shape[0]


if __name__ == "__main__":
    key = jax.random.PRNGKey(0)
    k1, k2, k3, k4 = jax.random.split(key, 4)

    # Case 1: small W+-style latents (whole batch in one block), centered path.
    B, N, D = 2, 8, 128
    latent = jax.random.normal(k1, (B, N, D), dtype=jnp.float32)
    latent_avg = jax.random.normal(k2, (N, D), dtype=jnp.float32) * 0.1

    loss = jax.block_until_ready(w_norm_loss(latent, latent_avg, start_from_latent_avg=True))
    ref = _reference(latent, latent_avg, start_from_latent_avg=True)
    assert jnp.allclose(loss, ref, rtol=1e-5, atol=1e-4), (loss, ref)

    # Case 2: uncentered path (no avg input, no subtraction inside the kernel).
    loss2 = jax.block_until_ready(w_norm_loss(latent, None, start_from_latent_avg=False))
    ref2 = _reference(latent, latent_avg, start_from_latent_avg=False)
    assert jnp.allclose(loss2, ref2, rtol=1e-5, atol=1e-4), (loss2, ref2)

    # Case 3: multi-block grid with a partial last block (B=20, TB=8) and a
    #         (D,)-shaped latent_avg (the common pSp/e4e case, broadcast over N).
    B3, N3, D3 = 20, 4, 128
    lat3 = jax.random.normal(k3, (B3, N3, D3), dtype=jnp.float32)
    avg3 = jax.random.normal(k4, (D3,), dtype=jnp.float32) * 0.1

    loss3 = jax.block_until_ready(
        w_norm_loss(lat3, avg3, start_from_latent_avg=True, block_rows=8)
    )
    ref3 = _reference(lat3, jnp.broadcast_to(avg3, (N3, D3)), start_from_latent_avg=True)
    assert jnp.allclose(loss3, ref3, rtol=1e-5, atol=1e-4), (loss3, ref3)

    print("KERNEL_OK")
</pallas_src>

<mosaic_0001>
module attributes {stable_mosaic.version = 11 : i64} {
  func.func @_wnorm_block_centered(%arg0: i32, %arg1: memref<2x1024xf32, #tpu.memory_space<vmem>>, %arg2: memref<1x1024xf32, #tpu.memory_space<vmem>>, %arg3: memref<1x1xf32, #tpu.memory_space<smem>>) attributes {dimension_semantics = [#tpu.dimension_semantics<parallel>], iteration_bounds = array<i64: 1>, scalar_prefetch = 0 : i64, scratch_operands = 0 : i64, tpu.core_type = #tpu.core_type<tc>, window_params = [{transform_indices = @transform_0, window_bounds = array<i64: 2, 1024>}, {pipeline_mode = #tpu.pipeline_mode<synchronous>, transform_indices = @transform_1, window_bounds = array<i64: 1, 1024>}, {transform_indices = @transform_2, window_bounds = array<i64: 1, 1>}]} {
    %c0 = arith.constant 0 : index
    %c0_0 = arith.constant 0 : index
    %0 = vector.load %arg1[%c0, %c0_0] : memref<2x1024xf32, #tpu.memory_space<vmem>>, vector<2x1024xf32>
    %c0_1 = arith.constant 0 : index
    %c0_2 = arith.constant 0 : index
    %1 = vector.load %arg2[%c0_1, %c0_2] : memref<1x1024xf32, #tpu.memory_space<vmem>>, vector<1x1024xf32>
    %2 = vector.broadcast %1 : vector<1x1024xf32> to vector<2x1024xf32>
    %3 = arith.subf %0, %2 : vector<2x1024xf32>
    %4 = arith.mulf %3, %3 : vector<2x1024xf32>
    %cst = arith.constant dense<0.000000e+00> : vector<2xf32>
    %5 = vector.multi_reduction <add>, %4, %cst [1] : vector<2x1024xf32> to vector<2xf32>
    %6 = vector.shape_cast %5 : vector<2xf32> to vector<2x1xf32>
    %7 = math.sqrt %6 : vector<2x1xf32>
    %8 = vector.shape_cast %7 : vector<2x1xf32> to vector<1x2x1xf32>
    %cst_3 = arith.constant dense<0.000000e+00> : vector<1xf32>
    %9 = vector.multi_reduction <add>, %8, %cst_3 [1, 2] : vector<1x2x1xf32> to vector<1xf32>
    %10 = vector.shape_cast %9 : vector<1xf32> to vector<1x1x1xf32>
    %11 = vector.extract %10[0, 0, 0] : f32 from vector<1x1x1xf32>
    %c0_4 = arith.constant 0 : index
    %c0_5 = arith.constant 0 : index
    %12 = memref.load %arg3[%c0_4, %c0_5] : memref<1x1xf32, #tpu.memory_space<smem>>
    memref.store %11, %arg3[%c0_4, %c0_5] : memref<1x1xf32, #tpu.memory_space<smem>>
    return
  }
  func.func @transform_0(%arg0: i32) -> (i32, i32) {
    %c0_i32 = arith.constant 0 : i32
    %c0_i32_0 = arith.constant 0 : i32
    return %arg0, %c0_i32 : i32, i32
  }
  func.func @transform_1(%arg0: i32) -> (i32, i32) {
    %c0_i32 = arith.constant 0 : i32
    %c0_i32_0 = arith.constant 0 : i32
    %c0_i32_1 = arith.constant 0 : i32
    return %c0_i32, %c0_i32_0 : i32, i32
  }
  func.func @transform_2(%arg0: i32) -> (i32, i32) {
    %c0_i32 = arith.constant 0 : i32
    %c0_i32_0 = arith.constant 0 : i32
    return %arg0, %c0_i32 : i32, i32
  }
}

</mosaic_0001>

<llo_original>
// kernel: tpu_custom_call.1
$region0: #{tpu_custom_call.1}
  #allocation0 [shape = 'u32[]', space=smem, size = 0x4, offset = 0x4, fixed_abs, tag = 'smem constant byte address 0x4 - core index']
  #allocation1 [shape = 'u32[144,128]{1,0:T(1,128)}', space=vmem, size = 0x12000, scoped, tag = 'internal scratch']
  %s0 = inlined_call_operand.hbm [shape: f32[2,1024], index: 0, kind: input, shape index: {}]
  %s1 = inlined_call_operand.hbm [shape: f32[1,1024], index: 1, kind: input, shape index: {}]
  %s2 = inlined_call_operand.hbm [shape: f32[1,1], index: 2, kind: output, shape index: {}]
  %s3 = sld [smem:[#allocation0]]
  $region26: #{tpu_custom_call.1} parent=0
    _
  %s5 = ssub.s32 1, %s3
  %s6 = scalar_select 0, %s5, %s3
  $region1: #{tpu_custom_call.1} parent=0
    #allocation2 [shape = 'u8[8192]{0}', space=vmem, size = 0x2000, scoped, tag = 'input window, operand 0, single buffered']
    #allocation3 [shape = 's32[1]{0}', space=sflag, size = 0x4, scoped, tag = 'scoped memory for tpu_custom_call.1']
    #allocation4 [shape = 's32[1]{0}', space=sflag, size = 0x4, scoped, tag = 'scoped memory for tpu_custom_call.1']
    #allocation5 [shape = 'u8[4096]{0}', space=vmem, size = 0x1000, scoped, tag = 'input window, operand 1, single buffered']
    #allocation6 [shape = 's32[1]{0}', space=sflag, size = 0x4, scoped, tag = 'scoped memory for tpu_custom_call.1']
    #allocation7 [shape = 'u8[512]{0}', space=smem, size = 0x200, scoped, tag = 'output window, operand 0, single buffered']
    %7 = vsyncpa [#allocation3], 0
    %8 = vsyncpa [#allocation6], 0
    %9 = vsyncpa [#allocation4], 0
    // Predicated region
    $region2: #{tpu_custom_call.1} parent=1 // pred_check
      _
    $region3: #{tpu_custom_call.1} parent=1 // pred_check_branch
      %11 = sbr.rel (0) target = $region5
    $region4: #{tpu_custom_call.1} parent=1 // pred_region
      %s13 = ssub.s32 256, 256
      %14 = vsyncadd [#allocation3], %s13
      %s16 = sshll.u32 [#allocation2], 4
      %s17 = int_to_ptr.vmem [resolvable:$true] %s16
      %19 = dma.hbm_to_vmem [thread:$0]  %s0, 256, %s17, [#allocation3]
    $region5: #{tpu_custom_call.1} parent=1 // pred_fallthru
      _
    // Predicated region
    $region6: #{tpu_custom_call.1} parent=1 // pred_check
      _
    $region7: #{tpu_custom_call.1} parent=1 // pred_check_branch
      %21 = sbr.rel (0) target = $region9
    $region8: #{tpu_custom_call.1} parent=1 // pred_region
      %s23 = ssub.s32 128, 128
      %24 = vsyncadd [#allocation6], %s23
      %s26 = sshll.u32 [#allocation5], 4
      %s27 = int_to_ptr.vmem [resolvable:$true] %s26
      %29 = dma.hbm_to_vmem [thread:$0]  %s1, 128, %s27, [#allocation6]
    $region9: #{tpu_custom_call.1} parent=1 // pred_fallthru
      _
    // Predicated region
    $region10: #{tpu_custom_call.1} parent=1 // pred_check
      _
    $region11: #{tpu_custom_call.1} parent=1 // pred_check_branch
      %31 = sbr.rel (0) target = $region13
    $region12: #{tpu_custom_call.1} parent=1 // pred_region
      %32 = dma.done [#allocation3], 256
    $region13: #{tpu_custom_call.1} parent=1 // pred_fallthru
      _
    // Predicated region
    $region14: #{tpu_custom_call.1} parent=1 // pred_check
      _
    $region15: #{tpu_custom_call.1} parent=1 // pred_check_branch
      %34 = sbr.rel (0) target = $region17
    $region16: #{tpu_custom_call.1} parent=1 // pred_region
      %35 = dma.done [#allocation6], 128
    $region17: #{tpu_custom_call.1} parent=1 // pred_fallthru
      _
    %v36 = vld [vmem:[#allocation2] sm:$0xff]
    %v37 = vld [vmem:[#allocation2 + $0x8] sm:$0xff]
    %v38 = vld [vmem:[#allocation5] sm:$0xff]
    %v40 = vlaneseq
    %v41 = vshrl.u32 %v40, 7
    %v42 = vsub.s32 0, %v41
    %v43 = vrot.slane %v38, %v42
    %v44 = vlaneseq
    %v45 = vshrl.u32 %v44, 7
    %v46 = vsub.s32 1, %v45
    %v47 = vrot.slane %v38, %v46
    %v48 = vlaneseq
    %v49 = vshrl.u32 %v48, 7
    %v50 = vsub.s32 2, %v49
    %v51 = vrot.slane %v38, %v50
    %v52 = vlaneseq
    %v53 = vshrl.u32 %v52, 7
    %v54 = vsub.s32 3, %v53
    %v55 = vrot.slane %v38, %v54
    %v56 = vlaneseq
    %v57 = vshrl.u32 %v56, 7
    %v58 = vsub.s32 4, %v57
    %v59 = vrot.slane %v38, %v58
    %v60 = vlaneseq
    %v61 = vshrl.u32 %v60, 7
    %v62 = vsub.s32 5, %v61
    %v63 = vrot.slane %v38, %v62
    %v64 = vlaneseq
    %v65 = vshrl.u32 %v64, 7
    %v66 = vsub.s32 6, %v65
    %v67 = vrot.slane %v38, %v66
    %v68 = vlaneseq
    %v69 = vshrl.u32 %v68, 7
    %v70 = vsub.s32 7, %v69
    %v71 = vrot.slane %v38, %v70
    %v72 = vcombine.low %v43, %v47
    %v73 = vcombine.low %v51, %v55
    %v75 = vunpack.c.l.s4 1983009808
    %v76 = vunpack.c.0.s8 %v75
    %v77 = vlaneseq
    %v78 = vshrl.u32 %v77, 7
    %v79 = vsub.s32 %v76, %v78
    %v80 = vrot.slane %v72, %v79
    %v82 = vunpack.c.l.s4 1983009808
    %v83 = vunpack.c.0.s8 %v82
    %v84 = vlaneseq
    %v85 = vshrl.u32 %v84, 7
    %v86 = vsub.s32 %v83, %v85
    %v87 = vrot.slane %v73, %v86
    %v88 = vcombine.low %v80, %v87
    %v89 = vcombine.low %v59, %v63
    %v90 = vcombine.low %v67, %v71
    %v92 = vunpack.c.l.s4 1983009808
    %v93 = vunpack.c.0.s8 %v92
    %v94 = vlaneseq
    %v95 = vshrl.u32 %v94, 7
    %v96 = vsub.s32 %v93, %v95
    %v97 = vrot.slane %v89, %v96
    %v99 = vunpack.c.l.s4 1983009808
    %v100 = vunpack.c.0.s8 %v99
    %v101 = vlaneseq
    %v102 = vshrl.u32 %v101, 7
    %v103 = vsub.s32 %v100, %v102
    %v104 = vrot.slane %v90, %v103
    %v105 = vcombine.low %v97, %v104
    %v108 = vsub.f32 %v36, %v88
    %v109 = vsub.f32 %v37, %v105
    %v110 = vmul.f32 %v108, %v108
    %v111 = vmul.f32 %v109, %v109
    %v114 = vcombine.high %v110, %v110
    %v116 = vunpack.c.l.s4 1983009808
    %v117 = vunpack.c.0.s8 %v116
    %v118 = vlaneseq
    %v119 = vshrl.u32 %v118, 7
    %v120 = vsub.s32 %v117, %v119
    %v121 = vrot.slane %v110, %v120
    %v123 = vunpack.c.l.s4 1983009808
    %v124 = vunpack.c.0.s8 %v123
    %v125 = vlaneseq
    %v126 = vshrl.u32 %v125, 7
    %v127 = vsub.s32 %v124, %v126
    %v128 = vrot.slane %v114, %v127
    %v129 = vcombine.high %v121, %v121
    %v130 = vcombine.high %v128, %v128
    %v131 = vcombine.high %v111, %v111
    %v133 = vunpack.c.l.s4 1983009808
    %v134 = vunpack.c.0.s8 %v133
    %v135 = vlaneseq
    %v136 = vshrl.u32 %v135, 7
    %v137 = vsub.s32 %v134, %v136
    %v138 = vrot.slane %v111, %v137
    %v140 = vunpack.c.l.s4 1983009808
    %v141 = vunpack.c.0.s8 %v140
    %v142 = vlaneseq
    %v143 = vshrl.u32 %v142, 7
    %v144 = vsub.s32 %v141, %v143
    %v145 = vrot.slane %v131, %v144
    %v146 = vcombine.high %v138, %v138
    %v147 = vcombine.high %v145, %v145
    %vm156 = vcmask 1041408
    %v157 = vsel %vm156, %v121, 0.0
    %v158 = vsel %vm156, %v129, 0.0
    %v159 = vadd.f32 %v157, %v158
    %v160 = vsel %vm156, %v128, 0.0
    %v161 = vadd.f32 %v159, %v160
    %v162 = vsel %vm156, %v130, 0.0
    %v163 = vadd.f32 %v161, %v162
    %v164 = vsel %vm156, %v138, 0.0
    %v165 = vadd.f32 %v163, %v164
    %v166 = vsel %vm156, %v146, 0.0
    %v167 = vadd.f32 %v165, %v166
    %v168 = vsel %vm156, %v145, 0.0
    %v169 = vadd.f32 %v167, %v168
    %v170 = vsel %vm156, %v147, 0.0
    %v171 = vadd.f32 %v169, %v170
    %172 = vadd.xlane.f32.xlu0 %v171
    %v173 = vpop.xlane.xlu0 %172
    %v174 = vrsqrt.pop %v173
    %v175 = vmul.f32 %v173, %v174
    %vm176 = vcmp.eq.f32.partialorder %v173, inf
    %v177 = vsel %vm176, %v173, %v175
    %vm178 = vcmp.eq.f32.partialorder %v173, 0.0
    %v179 = vand.u32 %v173, 2147483648
    %v180 = vsel %vm178, %v179, %v177
    %vm181 = vcmask 1024
    %v182 = vsel %vm181, %v180, 0.0
    %183 = vadd.xlane.f32.xlu0 %v182
    %v184 = vpop.xlane.xlu0 %183
    %v185 = vrot.slane %v184, 4
    %v186 = vadd.f32 %v184, %v185
    %v187 = vrot.slane %v186, 2
    %v188 = vadd.f32 %v186, %v187
    %v189 = vrot.slane %v188, 1
    %v190 = vadd.f32 %v188, %v189
    %s191 = vtos %v190
    %s192 = scalar_lea.smem [#allocation7], 0
    %193 = sst [smem:[%s192]] %s191
    // Predicated region
    $region18: #{tpu_custom_call.1} parent=1 // pred_check
      _
    $region19: #{tpu_custom_call.1} parent=1 // pred_check_branch
      %195 = sbr.rel (0) target = $region21
    $region20: #{tpu_custom_call.1} parent=1 // pred_region
      %s197 = ssub.s32 16, 16
      %198 = vsyncadd [#allocation4], %s197
      %201 = dma.smem_to_hbm [#allocation7], 16, %s2, [#allocation4]
    $region21: #{tpu_custom_call.1} parent=1 // pred_fallthru
      _
    // Predicated region
    $region22: #{tpu_custom_call.1} parent=1 // pred_check
      _
    $region23: #{tpu_custom_call.1} parent=1 // pred_check_branch
      %203 = sbr.rel (0) target = $region25
    $region24: #{tpu_custom_call.1} parent=1 // pred_region
      %204 = dma.done [#allocation4], 16
    $region25: #{tpu_custom_call.1} parent=1 // pred_fallthru
      _
    %205 = sfence
    %206 = vsyncpa [#allocation3], 1
    %207 = vsyncpa [#allocation6], 1
    %208 = vsyncpa [#allocation4], 1

</llo_original>
